<compile_context>
chip_gen: v7x
topology: tpu7x:2x2x1
jax: 0.10.0
libtpu: 0.0.40
codegen_flags: <defaults>
</compile_context>

<pallas_src>
import jax
import jax.numpy as jnp
from jax.experimental import pallas as pl
from jax.experimental.pallas import tpu as pltpu

LN_EPS = 1e-5


def _round_up(x, m):
    return ((x + m - 1) // m) * m


def _num_tensorcores():
    # v7x has 2 TensorCores per chip; v5e/v6e have 1.
    try:
        kind = (jax.devices()[0].device_kind or "").lower()
        if "v7" in kind:
            return 2
    except Exception:
        pass
    return 1


def _fusion_kernel(xt_ref, xq_ref, xa_ref,
                   w1_ref, b1_ref, w2r_ref,
                   w3_ref, b3_ref, g_ref, be_ref,
                   out_ref):
    mm_dtype = w1_ref.dtype          # matmul dtype (== w1/w3 dtype chosen in the wrapper)

    xt = xt_ref[...]
    xq = xq_ref[...]
    xa = xa_ref[...]

    w1 = w1_ref[...]
    b1 = b1_ref[...]
    w2r = w2r_ref[...]

    # --- additive-attention scores: one (tb,H)x(H,H) MXU dot per branch (no concat),
    #     then the (H,1) projection as a VPU multiply + lane reduce (keeps the MXU free).
    #     The scalar bias b2 is omitted: identical on all 3 branches -> cancels in softmax.
    def score(x):
        h = jnp.tanh(jnp.dot(x.astype(mm_dtype), w1,
                             preferred_element_type=jnp.float32) + b1)
        return jnp.sum(h * w2r, axis=-1, keepdims=True)          # (tb, 1), f32

    s_t = score(xt)
    s_q = score(xq)
    s_a = score(xa)

    # --- softmax over the 3 stacked branches (dim=1 of the stacked tensor), f32 ---
    m = jnp.maximum(jnp.maximum(s_t, s_q), s_a)
    e_t = jnp.exp(s_t - m)
    e_q = jnp.exp(s_q - m)
    e_a = jnp.exp(s_a - m)
    inv = pl.reciprocal(e_t + e_q + e_a, approx=True)             # EUP slot

    # --- weighted sum over the 3 branches (kept in f32 regardless of matmul dtype) ---
    fused = (e_t * xt.astype(jnp.float32)
             + e_q * xq.astype(jnp.float32)
             + e_a * xa.astype(jnp.float32)) * inv

    # --- output layer: Linear -> LayerNorm -> Dropout (identity in eval mode) ---
    y = jnp.dot(fused.astype(mm_dtype), w3_ref[...],
                preferred_element_type=jnp.float32) + b3_ref[...]
    mu = jnp.mean(y, axis=-1, keepdims=True)
    var = jnp.mean(jnp.square(y - mu), axis=-1, keepdims=True)
    y_norm = (y - mu) * jax.lax.rsqrt(var + LN_EPS)
    out_ref[...] = (y_norm * g_ref[...] + be_ref[...]).astype(out_ref.dtype)


def additive_attention_fusion(text, quad, attn, params, *, tb=512, matmul_dtype=None):
    """Fused additive-attention feature fusion.

    `tb` is the batch tile (sweepable).  `matmul_dtype` (e.g. jnp.bfloat16) casts only the
    MXU operands: the HxH weights in the wrapper, the activations in-kernel at the dot
    sites; softmax / weighted sum / LayerNorm stay in f32.
    """
    w1, b1, w2, b2, w3, b3, gamma, beta = params
    del b2  # identical bias on all 3 branch scores -> cancels exactly in the softmax
    B, H = text.shape
    out_dtype = text.dtype

    if matmul_dtype is not None:
        # Only the constant HxH weights are cast here; activation tiles are cast
        # inside the kernel (no extra HBM pass over the activations).
        w1 = w1.astype(matmul_dtype)
        w3 = w3.astype(matmul_dtype)

    # Small constant operands, all f32 rows.
    b1 = b1.reshape(1, H).astype(jnp.float32)
    w2_row = w2.reshape(1, H).astype(jnp.float32)
    b3 = b3.reshape(1, H).astype(jnp.float32)
    gamma = gamma.reshape(1, H).astype(jnp.float32)
    beta = beta.reshape(1, H).astype(jnp.float32)

    # Batch tiling: big MXU/HBM-friendly tiles rounded to the sublane packing; partial
    # last block handled by Pallas (no wrapper pad / slice).  Split into >= 2 grid steps
    # only on v7x (2 TensorCores); on single-TC chips one big tile is better.
    sub = 16 if text.dtype == jnp.bfloat16 else 8
    tb_eff = max(sub, min(_round_up(tb, sub), _round_up(B, sub)))
    if _num_tensorcores() > 1 and pl.cdiv(B, tb_eff) < 2 and _round_up(B, sub) >= 2 * sub:
        tb_eff = _round_up(pl.cdiv(B, 2), sub)
    grid = (pl.cdiv(B, tb_eff),)

    feat_spec = pl.BlockSpec((tb_eff, H), lambda i: (i, 0))

    def const_spec(a):
        # index_map never changes across the grid -> single-buffer (no dead VMEM).
        return pl.BlockSpec(a.shape, lambda i: (0, 0), pipeline_mode=pl.Buffered(1))

    # Explicit VMEM budget: single-buffered constants + double-buffered feature/output
    # tiles + slack for the in-kernel f32 temporaries; clamped to physical VMEM.
    est = (2 * H * H * w1.dtype.itemsize                  # w1, w3 (single-buffered)
           + 3 * 2 * tb_eff * H * text.dtype.itemsize     # feature tiles (double-buffered)
           + 2 * tb_eff * H * out_dtype.itemsize          # output tiles (double-buffered)
           + 5 * 8 * H * 4                                # (1,H) rows padded to 8 sublanes
           + 6 * tb_eff * H * 4)                          # f32 temporaries (h, fused, y, ...)
    try:
        phys = int(getattr(pltpu.get_tpu_info(), "vmem_capacity_bytes", 64 << 20))
    except Exception:
        phys = 64 << 20
    vmem_limit = int(min(max(est + (4 << 20), 32 << 20), max(phys - (8 << 20), 32 << 20)))

    return pl.pallas_call(
        _fusion_kernel,
        out_shape=jax.ShapeDtypeStruct((B, H), out_dtype),
        grid_spec=pltpu.PrefetchScalarGridSpec(
            num_scalar_prefetch=0,
            grid=grid,
            in_specs=[
                feat_spec, feat_spec, feat_spec,          # text, quad, attn tiles
                const_spec(w1), const_spec(b1),           # attention Linear 1
                const_spec(w2_row),                       # attention Linear 2 (VPU path)
                const_spec(w3), const_spec(b3),           # output Linear
                const_spec(gamma), const_spec(beta),      # LayerNorm affine
            ],
            out_specs=feat_spec,
        ),
        compiler_params=pltpu.CompilerParams(
            dimension_semantics=("parallel",),
            vmem_limit_bytes=vmem_limit),
    )(text, quad, attn, w1, b1, w2_row, w3, b3, gamma, beta)


def reference(text, quad, attn, params):
    w1, b1, w2, b2, w3, b3, gamma, beta = params
    feats = jnp.stack([text, quad, attn], axis=1)                  # (B,3,H)
    scores = jnp.tanh(feats @ w1 + b1) @ w2 + b2                   # (B,3,1)
    weights = jax.nn.softmax(scores, axis=1)
    fused = jnp.sum(weights * feats, axis=1)                       # (B,H)
    y = fused @ w3 + b3
    mu = jnp.mean(y, axis=-1, keepdims=True)
    var = jnp.mean(jnp.square(y - mu), axis=-1, keepdims=True)
    return (y - mu) / jnp.sqrt(var + LN_EPS) * gamma + beta


def init_params(key, hidden):
    ks = jax.random.split(key, 6)
    scale = 1.0 / jnp.sqrt(hidden)
    w1 = jax.random.uniform(ks[0], (hidden, hidden), jnp.float32, -scale, scale)
    b1 = jax.random.uniform(ks[1], (1, hidden), jnp.float32, -scale, scale)
    w2 = jax.random.uniform(ks[2], (hidden, 1), jnp.float32, -scale, scale)
    b2 = jax.random.uniform(ks[3], (1, 1), jnp.float32, -scale, scale)
    w3 = jax.random.uniform(ks[4], (hidden, hidden), jnp.float32, -scale, scale)
    b3 = jax.random.uniform(ks[5], (1, hidden), jnp.float32, -scale, scale)
    gamma = jnp.ones((1, hidden), jnp.float32)   # LayerNorm weight init
    beta = jnp.zeros((1, hidden), jnp.float32)   # LayerNorm bias init
    return (w1, b1, w2, b2, w3, b3, gamma, beta)


if __name__ == "__main__":
    H = 128
    key = jax.random.PRNGKey(0)
    k_t, k_q, k_a, k_p = jax.random.split(key, 4)
    params = init_params(k_p, H)

    # case 1: batch divisible by the sublane packing (f32 dots).
    # Tolerance accounts for the EUP approximate reciprocal in the softmax normalization.
    B = 16
    text = jax.random.normal(k_t, (B, H), jnp.float32)
    quad = jax.random.normal(k_q, (B, H), jnp.float32)
    attn = jax.random.normal(k_a, (B, H), jnp.float32)
    out = jax.block_until_ready(additive_attention_fusion(text, quad, attn, params))
    ref = reference(text, quad, attn, params)
    assert out.shape == (B, H)
    assert jnp.allclose(out, ref, atol=1e-2, rtol=1e-2), "mismatch vs pure-JAX reference"

    # case 2: ragged batch (exercises the Pallas-handled partial last block, no pad/slice).
    B2 = 13
    out2 = jax.block_until_ready(
        additive_attention_fusion(text[:B2], quad[:B2], attn[:B2], params))
    ref2 = reference(text[:B2], quad[:B2], attn[:B2], params)
    assert out2.shape == (B2, H)
    assert jnp.isfinite(out2).all()
    assert jnp.allclose(out2, ref2, atol=1e-2, rtol=1e-2), "mismatch on ragged batch"

    # case 3: bf16 MXU dots (in-kernel activation cast; softmax/LayerNorm stay f32).
    out3 = jax.block_until_ready(
        additive_attention_fusion(text, quad, attn, params, matmul_dtype=jnp.bfloat16))
    assert out3.shape == (B, H)
    assert jnp.allclose(out3, ref, atol=5e-2, rtol=5e-2), "mismatch with bf16 matmul dtype"

    print("KERNEL_OK")
</pallas_src>

<mosaic_0001>
module attributes {stable_mosaic.version = 11 : i64} {
  func.func @_fusion_kernel(%arg0: i32, %arg1: memref<16x128xf32, #tpu.memory_space<vmem>>, %arg2: memref<16x128xf32, #tpu.memory_space<vmem>>, %arg3: memref<16x128xf32, #tpu.memory_space<vmem>>, %arg4: memref<128x128xf32, #tpu.memory_space<vmem>>, %arg5: memref<1x128xf32, #tpu.memory_space<vmem>>, %arg6: memref<1x128xf32, #tpu.memory_space<vmem>>, %arg7: memref<128x128xf32, #tpu.memory_space<vmem>>, %arg8: memref<1x128xf32, #tpu.memory_space<vmem>>, %arg9: memref<1x128xf32, #tpu.memory_space<vmem>>, %arg10: memref<1x128xf32, #tpu.memory_space<vmem>>, %arg11: memref<16x128xf32, #tpu.memory_space<vmem>>) attributes {dimension_semantics = [#tpu.dimension_semantics<parallel>], iteration_bounds = array<i64: 1>, scalar_prefetch = 0 : i64, scratch_operands = 0 : i64, tpu.core_type = #tpu.core_type<tc>, window_params = [{transform_indices = @transform_0, window_bounds = array<i64: 16, 128>}, {transform_indices = @transform_1, window_bounds = array<i64: 16, 128>}, {transform_indices = @transform_2, window_bounds = array<i64: 16, 128>}, {pipeline_mode = #tpu.pipeline_mode<synchronous>, transform_indices = @transform_3, window_bounds = array<i64: 128, 128>}, {pipeline_mode = #tpu.pipeline_mode<synchronous>, transform_indices = @transform_4, window_bounds = array<i64: 1, 128>}, {pipeline_mode = #tpu.pipeline_mode<synchronous>, transform_indices = @transform_5, window_bounds = array<i64: 1, 128>}, {pipeline_mode = #tpu.pipeline_mode<synchronous>, transform_indices = @transform_6, window_bounds = array<i64: 128, 128>}, {pipeline_mode = #tpu.pipeline_mode<synchronous>, transform_indices = @transform_7, window_bounds = array<i64: 1, 128>}, {pipeline_mode = #tpu.pipeline_mode<synchronous>, transform_indices = @transform_8, window_bounds = array<i64: 1, 128>}, {pipeline_mode = #tpu.pipeline_mode<synchronous>, transform_indices = @transform_9, window_bounds = array<i64: 1, 128>}, {transform_indices = @transform_10, window_bounds = array<i64: 16, 128>}]} {
    %c0 = arith.constant 0 : index
    %c0_0 = arith.constant 0 : index
    %0 = vector.load %arg1[%c0, %c0_0] : memref<16x128xf32, #tpu.memory_space<vmem>>, vector<16x128xf32>
    %c0_1 = arith.constant 0 : index
    %c0_2 = arith.constant 0 : index
    %1 = vector.load %arg2[%c0_1, %c0_2] : memref<16x128xf32, #tpu.memory_space<vmem>>, vector<16x128xf32>
    %c0_3 = arith.constant 0 : index
    %c0_4 = arith.constant 0 : index
    %2 = vector.load %arg3[%c0_3, %c0_4] : memref<16x128xf32, #tpu.memory_space<vmem>>, vector<16x128xf32>
    %c0_5 = arith.constant 0 : index
    %c0_6 = arith.constant 0 : index
    %3 = vector.load %arg4[%c0_5, %c0_6] : memref<128x128xf32, #tpu.memory_space<vmem>>, vector<128x128xf32>
    %c0_7 = arith.constant 0 : index
    %c0_8 = arith.constant 0 : index
    %4 = vector.load %arg5[%c0_7, %c0_8] : memref<1x128xf32, #tpu.memory_space<vmem>>, vector<1x128xf32>
    %c0_9 = arith.constant 0 : index
    %c0_10 = arith.constant 0 : index
    %5 = vector.load %arg6[%c0_9, %c0_10] : memref<1x128xf32, #tpu.memory_space<vmem>>, vector<1x128xf32>
    %cst = arith.constant dense<0.000000e+00> : vector<16x128xf32>
    %6 = tpu.matmul %0, %3, %cst {dimension_numbers = #tpu.dot_dimension_numbers<[1], [0], [0], [1], [0, 0, 1, 1], [], []>} : vector<16x128xf32>, vector<128x128xf32>, vector<16x128xf32> -> vector<16x128xf32>
    %7 = vector.broadcast %4 : vector<1x128xf32> to vector<16x128xf32>
    %8 = arith.addf %6, %7 : vector<16x128xf32>
    %9 = math.tanh %8 : vector<16x128xf32>
    %10 = vector.broadcast %5 : vector<1x128xf32> to vector<16x128xf32>
    %11 = arith.mulf %9, %10 : vector<16x128xf32>
    %cst_11 = arith.constant dense<0.000000e+00> : vector<16xf32>
    %12 = vector.multi_reduction <add>, %11, %cst_11 [1] : vector<16x128xf32> to vector<16xf32>
    %13 = vector.shape_cast %12 : vector<16xf32> to vector<16x1xf32>
    %cst_12 = arith.constant dense<0.000000e+00> : vector<16x128xf32>
    %14 = tpu.matmul %1, %3, %cst_12 {dimension_numbers = #tpu.dot_dimension_numbers<[1], [0], [0], [1], [0, 0, 1, 1], [], []>} : vector<16x128xf32>, vector<128x128xf32>, vector<16x128xf32> -> vector<16x128xf32>
    %15 = vector.broadcast %4 : vector<1x128xf32> to vector<16x128xf32>
    %16 = arith.addf %14, %15 : vector<16x128xf32>
    %17 = math.tanh %16 : vector<16x128xf32>
    %18 = vector.broadcast %5 : vector<1x128xf32> to vector<16x128xf32>
    %19 = arith.mulf %17, %18 : vector<16x128xf32>
    %cst_13 = arith.constant dense<0.000000e+00> : vector<16xf32>
    %20 = vector.multi_reduction <add>, %19, %cst_13 [1] : vector<16x128xf32> to vector<16xf32>
    %21 = vector.shape_cast %20 : vector<16xf32> to vector<16x1xf32>
    %cst_14 = arith.constant dense<0.000000e+00> : vector<16x128xf32>
    %22 = tpu.matmul %2, %3, %cst_14 {dimension_numbers = #tpu.dot_dimension_numbers<[1], [0], [0], [1], [0, 0, 1, 1], [], []>} : vector<16x128xf32>, vector<128x128xf32>, vector<16x128xf32> -> vector<16x128xf32>
    %23 = vector.broadcast %4 : vector<1x128xf32> to vector<16x128xf32>
    %24 = arith.addf %22, %23 : vector<16x128xf32>
    %25 = math.tanh %24 : vector<16x128xf32>
    %26 = vector.broadcast %5 : vector<1x128xf32> to vector<16x128xf32>
    %27 = arith.mulf %25, %26 : vector<16x128xf32>
    %cst_15 = arith.constant dense<0.000000e+00> : vector<16xf32>
    %28 = vector.multi_reduction <add>, %27, %cst_15 [1] : vector<16x128xf32> to vector<16xf32>
    %29 = vector.shape_cast %28 : vector<16xf32> to vector<16x1xf32>
    %30 = arith.maximumf %13, %21 : vector<16x1xf32>
    %31 = arith.maximumf %30, %29 : vector<16x1xf32>
    %32 = arith.subf %13, %31 : vector<16x1xf32>
    %33 = math.exp %32 : vector<16x1xf32>
    %34 = arith.subf %21, %31 : vector<16x1xf32>
    %35 = math.exp %34 : vector<16x1xf32>
    %36 = arith.subf %29, %31 : vector<16x1xf32>
    %37 = math.exp %36 : vector<16x1xf32>
    %38 = arith.addf %33, %35 : vector<16x1xf32>
    %39 = arith.addf %38, %37 : vector<16x1xf32>
    %40 = tpu.reciprocal %39 {approx = true} : vector<16x1xf32> -> vector<16x1xf32>
    %41 = vector.broadcast %33 : vector<16x1xf32> to vector<16x128xf32>
    %42 = arith.mulf %41, %0 : vector<16x128xf32>
    %43 = vector.broadcast %35 : vector<16x1xf32> to vector<16x128xf32>
    %44 = arith.mulf %43, %1 : vector<16x128xf32>
    %45 = arith.addf %42, %44 : vector<16x128xf32>
    %46 = vector.broadcast %37 : vector<16x1xf32> to vector<16x128xf32>
    %47 = arith.mulf %46, %2 : vector<16x128xf32>
    %48 = arith.addf %45, %47 : vector<16x128xf32>
    %49 = vector.broadcast %40 : vector<16x1xf32> to vector<16x128xf32>
    %50 = arith.mulf %48, %49 : vector<16x128xf32>
    %c0_16 = arith.constant 0 : index
    %c0_17 = arith.constant 0 : index
    %51 = vector.load %arg7[%c0_16, %c0_17] : memref<128x128xf32, #tpu.memory_space<vmem>>, vector<128x128xf32>
    %cst_18 = arith.constant dense<0.000000e+00> : vector<16x128xf32>
    %52 = tpu.matmul %50, %51, %cst_18 {dimension_numbers = #tpu.dot_dimension_numbers<[1], [0], [0], [1], [0, 0, 1, 1], [], []>} : vector<16x128xf32>, vector<128x128xf32>, vector<16x128xf32> -> vector<16x128xf32>
    %c0_19 = arith.constant 0 : index
    %c0_20 = arith.constant 0 : index
    %53 = vector.load %arg8[%c0_19, %c0_20] : memref<1x128xf32, #tpu.memory_space<vmem>>, vector<1x128xf32>
    %54 = vector.broadcast %53 : vector<1x128xf32> to vector<16x128xf32>
    %55 = arith.addf %52, %54 : vector<16x128xf32>
    %cst_21 = arith.constant dense<0.000000e+00> : vector<16xf32>
    %56 = vector.multi_reduction <add>, %55, %cst_21 [1] : vector<16x128xf32> to vector<16xf32>
    %57 = vector.shape_cast %56 : vector<16xf32> to vector<16x1xf32>
    %cst_22 = arith.constant 1.280000e+02 : f32
    %58 = vector.broadcast %cst_22 : f32 to vector<16x1xf32>
    %59 = arith.divf %57, %58 : vector<16x1xf32>
    %60 = vector.broadcast %59 : vector<16x1xf32> to vector<16x128xf32>
    %61 = arith.subf %55, %60 : vector<16x128xf32>
    %62 = arith.mulf %61, %61 : vector<16x128xf32>
    %cst_23 = arith.constant dense<0.000000e+00> : vector<16xf32>
    %63 = vector.multi_reduction <add>, %62, %cst_23 [1] : vector<16x128xf32> to vector<16xf32>
    %64 = vector.shape_cast %63 : vector<16xf32> to vector<16x1xf32>
    %cst_24 = arith.constant 1.280000e+02 : f32
    %65 = vector.broadcast %cst_24 : f32 to vector<16x1xf32>
    %66 = arith.divf %64, %65 : vector<16x1xf32>
    %67 = vector.broadcast %59 : vector<16x1xf32> to vector<16x128xf32>
    %68 = arith.subf %55, %67 : vector<16x128xf32>
    %cst_25 = arith.constant 9.99999974E-6 : f32
    %69 = vector.broadcast %cst_25 : f32 to vector<16x1xf32>
    %70 = arith.addf %66, %69 : vector<16x1xf32>
    %71 = math.rsqrt %70 : vector<16x1xf32>
    %72 = vector.broadcast %71 : vector<16x1xf32> to vector<16x128xf32>
    %73 = arith.mulf %68, %72 : vector<16x128xf32>
    %c0_26 = arith.constant 0 : index
    %c0_27 = arith.constant 0 : index
    %74 = vector.load %arg9[%c0_26, %c0_27] : memref<1x128xf32, #tpu.memory_space<vmem>>, vector<1x128xf32>
    %75 = vector.broadcast %74 : vector<1x128xf32> to vector<16x128xf32>
    %76 = arith.mulf %73, %75 : vector<16x128xf32>
    %c0_28 = arith.constant 0 : index
    %c0_29 = arith.constant 0 : index
    %77 = vector.load %arg10[%c0_28, %c0_29] : memref<1x128xf32, #tpu.memory_space<vmem>>, vector<1x128xf32>
    %78 = vector.broadcast %77 : vector<1x128xf32> to vector<16x128xf32>
    %79 = arith.addf %76, %78 : vector<16x128xf32>
    %c0_30 = arith.constant 0 : index
    %c0_31 = arith.constant 0 : index
    %80 = vector.load %arg11[%c0_30, %c0_31] : memref<16x128xf32, #tpu.memory_space<vmem>>, vector<16x128xf32>
    tpu.vector_store %arg11[%c0_30, %c0_31], %79 {strides = array<i32>} : memref<16x128xf32, #tpu.memory_space<vmem>>, vector<16x128xf32>,
    return
  }
  func.func @transform_0(%arg0: i32) -> (i32, i32) {
    %c0_i32 = arith.constant 0 : i32
    %c0_i32_0 = arith.constant 0 : i32
    return %arg0, %c0_i32 : i32, i32
  }
  func.func @transform_1(%arg0: i32) -> (i32, i32) {
    %c0_i32 = arith.constant 0 : i32
    %c0_i32_0 = arith.constant 0 : i32
    return %arg0, %c0_i32 : i32, i32
  }
  func.func @transform_2(%arg0: i32) -> (i32, i32) {
    %c0_i32 = arith.constant 0 : i32
    %c0_i32_0 = arith.constant 0 : i32
    return %arg0, %c0_i32 : i32, i32
  }
  func.func @transform_3(%arg0: i32) -> (i32, i32) {
    %c0_i32 = arith.constant 0 : i32
    %c0_i32_0 = arith.constant 0 : i32
    %c0_i32_1 = arith.constant 0 : i32
    return %c0_i32, %c0_i32_0 : i32, i32
  }
  func.func @transform_4(%arg0: i32) -> (i32, i32) {
    %c0_i32 = arith.constant 0 : i32
    %c0_i32_0 = arith.constant 0 : i32
    %c0_i32_1 = arith.constant 0 : i32
    return %c0_i32, %c0_i32_0 : i32, i32
  }
  func.func @transform_5(%arg0: i32) -> (i32, i32) {
    %c0_i32 = arith.constant 0 : i32
    %c0_i32_0 = arith.constant 0 : i32
    %c0_i32_1 = arith.constant 0 : i32
    return %c0_i32, %c0_i32_0 : i32, i32
  }
  func.func @transform_6(%arg0: i32) -> (i32, i32) {
    %c0_i32 = arith.constant 0 : i32
    %c0_i32_0 = arith.constant 0 : i32
    %c0_i32_1 = arith.constant 0 : i32
    return %c0_i32, %c0_i32_0 : i32, i32
  }
  func.func @transform_7(%arg0: i32) -> (i32, i32) {
    %c0_i32 = arith.constant 0 : i32
    %c0_i32_0 = arith.constant 0 : i32
    %c0_i32_1 = arith.constant 0 : i32
    return %c0_i32, %c0_i32_0 : i32, i32
  }
  func.func @transform_8(%arg0: i32) -> (i32, i32) {
    %c0_i32 = arith.constant 0 : i32
    %c0_i32_0 = arith.constant 0 : i32
    %c0_i32_1 = arith.constant 0 : i32
    return %c0_i32, %c0_i32_0 : i32, i32
  }
  func.func @transform_9(%arg0: i32) -> (i32, i32) {
    %c0_i32 = arith.constant 0 : i32
    %c0_i32_0 = arith.constant 0 : i32
    %c0_i32_1 = arith.constant 0 : i32
    return %c0_i32, %c0_i32_0 : i32, i32
  }
  func.func @transform_10(%arg0: i32) -> (i32, i32) {
    %c0_i32 = arith.constant 0 : i32
    %c0_i32_0 = arith.constant 0 : i32
    return %arg0, %c0_i32 : i32, i32
  }
}

</mosaic_0001>

<llo_original>
// kernel: tpu_custom_call.1
$region0: #{tpu_custom_call.1}
  #allocation0 [shape = 'u32[]', space=smem, size = 0x4, offset = 0x4, fixed_abs, tag = 'smem constant byte address 0x4 - core index']
  #allocation1 [shape = 'u32[144,128]{1,0:T(1,128)}', space=vmem, size = 0x12000, scoped, tag = 'internal scratch']
  %s0 = inlined_call_operand.hbm [shape: f32[16,128], index: 0, kind: input, shape index: {}]
  %s1 = inlined_call_operand.hbm [shape: f32[16,128], index: 1, kind: input, shape index: {}]
  %s2 = inlined_call_operand.hbm [shape: f32[16,128], index: 2, kind: input, shape index: {}]
  %s3 = inlined_call_operand.hbm [shape: f32[128,128], index: 3, kind: input, shape index: {}]
  %s4 = inlined_call_operand.vmem [shape: f32[1,128], index: 4, kind: input, shape index: {}]
  %s5 = inlined_call_operand.vmem [shape: f32[1,128], index: 5, kind: input, shape index: {}]
  %s6 = inlined_call_operand.hbm [shape: f32[128,128], index: 6, kind: input, shape index: {}]
  %s7 = inlined_call_operand.vmem [shape: f32[1,128], index: 7, kind: input, shape index: {}]
  %s8 = inlined_call_operand.vmem [shape: f32[1,128], index: 8, kind: input, shape index: {}]
  %s9 = inlined_call_operand.vmem [shape: f32[1,128], index: 9, kind: input, shape index: {}]
  %s10 = inlined_call_operand.hbm [shape: f32[16,128], index: 10, kind: output, shape index: {}]
  %s11 = sld [smem:[#allocation0]]
  $region70: #{tpu_custom_call.1} parent=0
    _
  %s13 = ssub.s32 1, %s11
  %s14 = scalar_select 0, %s13, %s11
  $region1: #{tpu_custom_call.1} parent=0
    #allocation2 [shape = 'u8[8192]{0}', space=vmem, size = 0x2000, scoped, tag = 'input window, operand 0, single buffered']
    #allocation3 [shape = 's32[1]{0}', space=sflag, size = 0x4, scoped, tag = 'scoped memory for tpu_custom_call.1']
    #allocation4 [shape = 's32[1]{0}', space=sflag, size = 0x4, scoped, tag = 'scoped memory for tpu_custom_call.1']
    #allocation5 [shape = 'u8[8192]{0}', space=vmem, size = 0x2000, scoped, tag = 'input window, operand 1, single buffered']
    #allocation6 [shape = 's32[1]{0}', space=sflag, size = 0x4, scoped, tag = 'scoped memory for tpu_custom_call.1']
    #allocation7 [shape = 'u8[8192]{0}', space=vmem, size = 0x2000, scoped, tag = 'input window, operand 2, single buffered']
    #allocation8 [shape = 'u8[65536]{0}', space=vmem, size = 0x10000, scoped, tag = 'input window, operand 3, single buffered']
    #allocation9 [shape = 's32[1]{0}', space=sflag, size = 0x4, scoped, tag = 'scoped memory for tpu_custom_call.1']
    #allocation10 [shape = 'u8[65536]{0}', space=vmem, size = 0x10000, scoped, tag = 'input window, operand 6, single buffered']
    #allocation11 [shape = 'u8[8192]{0}', space=vmem, size = 0x2000, scoped, tag = 'output window, operand 0, single buffered']
    %15 = vsyncpa [#allocation3], 0
    %16 = vsyncpa [#allocation6], 0
    %17 = vsyncpa [#allocation9], 0
    %18 = vsyncpa [#allocation4], 0
    // Predicated region
    $region2: #{tpu_custom_call.1} parent=1 // pred_check
      _
    $region3: #{tpu_custom_call.1} parent=1 // pred_check_branch
      %20 = sbr.rel (0) target = $region5
    $region4: #{tpu_custom_call.1} parent=1 // pred_region
      %s22 = ssub.s32 256, 256
      %23 = vsyncadd [#allocation3], %s22
      %s24 = sshll.u32 [#allocation2], 4
      %s25 = int_to_ptr.vmem [resolvable:$true] %s24
      %30 = dma.hbm_to_vmem [thread:$0]  %s0, 256, %s25, [#allocation3], 128, 128, 8
    $region5: #{tpu_custom_call.1} parent=1 // pred_fallthru
      _
    // Predicated region
    $region6: #{tpu_custom_call.1} parent=1 // pred_check
      _
    $region7: #{tpu_custom_call.1} parent=1 // pred_check_branch
      %32 = sbr.rel (0) target = $region9
    $region8: #{tpu_custom_call.1} parent=1 // pred_region
      %s34 = ssub.s32 256, 256
      %35 = vsyncadd [#allocation6], %s34
      %s36 = sshll.u32 [#allocation5], 4
      %s37 = int_to_ptr.vmem [resolvable:$true] %s36
      %42 = dma.hbm_to_vmem [thread:$0]  %s1, 256, %s37, [#allocation6], 128, 128, 8
    $region9: #{tpu_custom_call.1} parent=1 // pred_fallthru
      _
    // Predicated region
    $region10: #{tpu_custom_call.1} parent=1 // pred_check
      _
    $region11: #{tpu_custom_call.1} parent=1 // pred_check_branch
      %44 = sbr.rel (0) target = $region13
    $region12: #{tpu_custom_call.1} parent=1 // pred_region
      %s46 = ssub.s32 256, 256
      %47 = vsyncadd [#allocation6], %s46
      %s48 = sshll.u32 [#allocation7], 4
      %s49 = int_to_ptr.vmem [resolvable:$true] %s48
      %54 = dma.hbm_to_vmem [thread:$0]  %s2, 256, %s49, [#allocation6], 128, 128, 8
    $region13: #{tpu_custom_call.1} parent=1 // pred_fallthru
      _
    // Predicated region
    $region14: #{tpu_custom_call.1} parent=1 // pred_check
      _
    $region15: #{tpu_custom_call.1} parent=1 // pred_check_branch
      %56 = sbr.rel (0) target = $region17
    $region16: #{tpu_custom_call.1} parent=1 // pred_region
      %s58 = ssub.s32 2048, 2048
      %59 = vsyncadd [#allocation9], %s58
      %s60 = sshll.u32 [#allocation8], 4
      %s61 = int_to_ptr.vmem [resolvable:$true] %s60
      %66 = dma.hbm_to_vmem [thread:$0]  %s3, 2048, %s61, [#allocation9], 128, 128, 8
    $region17: #{tpu_custom_call.1} parent=1 // pred_fallthru
      _
    // Predicated region
    $region18: #{tpu_custom_call.1} parent=1 // pred_check
      _
    $region19: #{tpu_custom_call.1} parent=1 // pred_check_branch
      %68 = sbr.rel (0) target = $region21
    $region20: #{tpu_custom_call.1} parent=1 // pred_region
      _
    $region21: #{tpu_custom_call.1} parent=1 // pred_fallthru
      _
    // Predicated region
    $region22: #{tpu_custom_call.1} parent=1 // pred_check
      _
    $region23: #{tpu_custom_call.1} parent=1 // pred_check_branch
      %70 = sbr.rel (0) target = $region25
    $region24: #{tpu_custom_call.1} parent=1 // pred_region
      _
    $region25: #{tpu_custom_call.1} parent=1 // pred_fallthru
      _
    // Predicated region
    $region26: #{tpu_custom_call.1} parent=1 // pred_check
      _
    $region27: #{tpu_custom_call.1} parent=1 // pred_check_branch
      %72 = sbr.rel (0) target = $region29
    $region28: #{tpu_custom_call.1} parent=1 // pred_region
      %s74 = ssub.s32 2048, 2048
      %75 = vsyncadd [#allocation9], %s74
      %s76 = sshll.u32 [#allocation10], 4
      %s77 = int_to_ptr.vmem [resolvable:$true] %s76
      %82 = dma.hbm_to_vmem [thread:$0]  %s6, 2048, %s77, [#allocation9], 128, 128, 8
    $region29: #{tpu_custom_call.1} parent=1 // pred_fallthru
      _
    // Predicated region
    $region30: #{tpu_custom_call.1} parent=1 // pred_check
      _
    $region31: #{tpu_custom_call.1} parent=1 // pred_check_branch
      %84 = sbr.rel (0) target = $region33
    $region32: #{tpu_custom_call.1} parent=1 // pred_region
      _
    $region33: #{tpu_custom_call.1} parent=1 // pred_fallthru
      _
    // Predicated region
    $region34: #{tpu_custom_call.1} parent=1 // pred_check
      _
    $region35: #{tpu_custom_call.1} parent=1 // pred_check_branch
      %86 = sbr.rel (0) target = $region37
    $region36: #{tpu_custom_call.1} parent=1 // pred_region
      _
    $region37: #{tpu_custom_call.1} parent=1 // pred_fallthru
      _
    // Predicated region
    $region38: #{tpu_custom_call.1} parent=1 // pred_check
      _
    $region39: #{tpu_custom_call.1} parent=1 // pred_check_branch
      %88 = sbr.rel (0) target = $region41
    $region40: #{tpu_custom_call.1} parent=1 // pred_region
      _
    $region41: #{tpu_custom_call.1} parent=1 // pred_fallthru
      _
    // Predicated region
    $region42: #{tpu_custom_call.1} parent=1 // pred_check
      _
    $region43: #{tpu_custom_call.1} parent=1 // pred_check_branch
      %90 = sbr.rel (0) target = $region45
    $region44: #{tpu_custom_call.1} parent=1 // pred_region
      %91 = dma.done [#allocation3], 256
    $region45: #{tpu_custom_call.1} parent=1 // pred_fallthru
      _
    // Predicated region
    $region46: #{tpu_custom_call.1} parent=1 // pred_check
      _
    $region47: #{tpu_custom_call.1} parent=1 // pred_check_branch
      %93 = sbr.rel (0) target = $region49
    $region48: #{tpu_custom_call.1} parent=1 // pred_region
      %94 = dma.done [#allocation6], 256
    $region49: #{tpu_custom_call.1} parent=1 // pred_fallthru
      _
    // Predicated region
    $region50: #{tpu_custom_call.1} parent=1 // pred_check
      _
    $region51: #{tpu_custom_call.1} parent=1 // pred_check_branch
      %96 = sbr.rel (0) target = $region53
    $region52: #{tpu_custom_call.1} parent=1 // pred_region
      %97 = dma.done [#allocation6], 256
    $region53: #{tpu_custom_call.1} parent=1 // pred_fallthru
      _
    // Predicated region
    $region54: #{tpu_custom_call.1} parent=1 // pred_check
      _
    $region55: #{tpu_custom_call.1} parent=1 // pred_check_branch
      %99 = sbr.rel (0) target = $region57
    $region56: #{tpu_custom_call.1} parent=1 // pred_region
      %100 = dma.done [#allocation9], 2048
    $region57: #{tpu_custom_call.1} parent=1 // pred_fallthru
      _
    // Predicated region
    $region58: #{tpu_custom_call.1} parent=1 // pred_check
      _
    $region59: #{tpu_custom_call.1} parent=1 // pred_check_branch
      %102 = sbr.rel (0) target = $region61
    $region60: #{tpu_custom_call.1} parent=1 // pred_region
      %103 = dma.done [#allocation9], 2048
    $region61: #{tpu_custom_call.1} parent=1 // pred_fallthru
      _
    %v104 = vld [vmem:[#allocation2] sm:$0xff]
    %v105 = vld [vmem:[#allocation2 + $0x8] sm:$0xff]
    %v106 = vld [vmem:[#allocation5] sm:$0xff]
    %v107 = vld [vmem:[#allocation5 + $0x8] sm:$0xff]
    %v108 = vld [vmem:[#allocation7] sm:$0xff]
    %v109 = vld [vmem:[#allocation7 + $0x8] sm:$0xff]
    %v110 = vld [vmem:[#allocation8] sm:$0xff]
    %v111 = vld [vmem:[#allocation8 + $0x8] sm:$0xff]
    %v112 = vld [vmem:[#allocation8 + $0x10] sm:$0xff]
    %v113 = vld [vmem:[#allocation8 + $0x18] sm:$0xff]
    %v114 = vld [vmem:[#allocation8 + $0x20] sm:$0xff]
    %v115 = vld [vmem:[#allocation8 + $0x28] sm:$0xff]
    %v116 = vld [vmem:[#allocation8 + $0x30] sm:$0xff]
    %v117 = vld [vmem:[#allocation8 + $0x38] sm:$0xff]
    %v118 = vld [vmem:[#allocation8 + $0x40] sm:$0xff]
    %v119 = vld [vmem:[#allocation8 + $0x48] sm:$0xff]
    %v120 = vld [vmem:[#allocation8 + $0x50] sm:$0xff]
    %v121 = vld [vmem:[#allocation8 + $0x58] sm:$0xff]
    %v122 = vld [vmem:[#allocation8 + $0x60] sm:$0xff]
    %v123 = vld [vmem:[#allocation8 + $0x68] sm:$0xff]
    %v124 = vld [vmem:[#allocation8 + $0x70] sm:$0xff]
    %v125 = vld [vmem:[#allocation8 + $0x78] sm:$0xff]
    %v126 = vld [vmem:[%s4] sm:$0x1]
    %v127 = vld [vmem:[%s5] sm:$0x1]
    %v129 = vlaneseq
    %v130 = vshrl.u32 %v129, 7
    %v131 = vsub.s32 0, %v130
    %v132 = vrot.slane %v126, %v131
    %134 = vmatprep.subr.mxu0 0.0
    %135 = vmatpush1.msra.mxu0 %v110
    %136 = vmatprep.subr.mxu0 0.0
    %137 = vmatpush1.msra.mxu0 %v111
    %138 = vmatprep.subr.mxu0 0.0
    %139 = vmatpush1.msra.mxu0 %v112
    %140 = vmatprep.subr.mxu0 0.0
    %141 = vmatpush1.msra.mxu0 %v113
    %142 = vmatprep.subr.mxu0 0.0
    %143 = vmatpush1.msra.mxu0 %v114
    %144 = vmatprep.subr.mxu0 0.0
    %145 = vmatpush1.msra.mxu0 %v115
    %146 = vmatprep.subr.mxu0 0.0
    %147 = vmatpush1.msra.mxu0 %v116
    %148 = vmatprep.subr.mxu0 0.0
    %149 = vmatpush1.msra.mxu0 %v117
    %150 = vmatprep.subr.mxu0 0.0
    %151 = vmatpush1.msra.mxu0 %v118
    %152 = vmatprep.subr.mxu0 0.0
    %153 = vmatpush1.msra.mxu0 %v119
    %154 = vmatprep.subr.mxu0 0.0
    %155 = vmatpush1.msra.mxu0 %v120
    %156 = vmatprep.subr.mxu0 0.0
    %157 = vmatpush1.msra.mxu0 %v121
    %158 = vmatprep.subr.mxu0 0.0
    %159 = vmatpush1.msra.mxu0 %v122
    %160 = vmatprep.subr.mxu0 0.0
    %161 = vmatpush1.msra.mxu0 %v123
    %162 = vmatprep.subr.mxu0 0.0
    %163 = vmatpush1.msra.mxu0 %v124
    %164 = vmatprep.subr.mxu0 0.0
    %165 = vmatpush1.msra.mxu0 %v125
    %166 = vmatprep.subr.mxu0 0.0
    %167 = vmatpush1.msra.mxu0 0.0
    %168 = vmatprep.subr.mxu0 0.0
    %169 = vmatpush1.msra.mxu0 0.0
    %170 = vmatprep.subr.mxu0 0.0
    %171 = vmatpush1.msra.mxu0 0.0
    %172 = vmatprep.subr.mxu0 0.0
    %173 = vmatpush1.msra.mxu0 0.0
    %174 = vmatprep.subr.mxu0 0.0
    %175 = vmatpush1.msra.mxu0 0.0
    %176 = vmatprep.subr.mxu0 0.0
    %177 = vmatpush1.msra.mxu0 0.0
    %178 = vmatprep.subr.mxu0 0.0
    %179 = vmatpush1.msra.mxu0 0.0
    %180 = vmatprep.subr.mxu0 0.0
    %181 = vmatpush1.msra.mxu0 0.0
    %182 = vmatprep.subr.mxu0 0.0
    %183 = vmatpush1.msra.mxu0 0.0
    %184 = vmatprep.subr.mxu0 0.0
    %185 = vmatpush1.msra.mxu0 0.0
    %186 = vmatprep.subr.mxu0 0.0
    %187 = vmatpush1.msra.mxu0 0.0
    %188 = vmatprep.subr.mxu0 0.0
    %189 = vmatpush1.msra.mxu0 0.0
    %190 = vmatprep.subr.mxu0 0.0
    %191 = vmatpush1.msra.mxu0 0.0
    %192 = vmatprep.subr.mxu0 0.0
    %193 = vmatpush1.msra.mxu0 0.0
    %194 = vmatprep.subr.mxu0 0.0
    %195 = vmatpush1.msra.mxu0 0.0
    %196 = vmatprep.subr.mxu0 0.0
    %197 = vmatpush1.msra.mxu0 0.0
    %198 = vmatprep.mubr.f32.mxu0 0.0
    %199 = vmatmul.mubr.f32.gmra.mrb[0].mxu0 %v104
    %v200 = vpop.f32.mrb[0].mxu0
    %v201 = vadd.f32 %v132, %v200
    %v202 = vpop.f32.mrb[0].mxu0
    %203 = vmatprep.mubr.f32.mxu0 0.0
    %204 = vmatmul.mubr.f32.gmra.mrb[0].mxu0 %v105
    %v205 = vpop.f32.mrb[0].mxu0
    %v206 = vadd.f32 %v132, %v205
    %v207 = vpop.f32.mrb[0].mxu0
    %208 = vdwg.mxu0
    %v209 = vtanh.pop %v201
    %v210 = vtanh.pop %v206
    %v212 = vlaneseq
    %v213 = vshrl.u32 %v212, 7
    %v214 = vsub.s32 0, %v213
    %v215 = vrot.slane %v127, %v214
    %v217 = vmul.f32 %v209, %v215
    %v218 = vmul.f32 %v210, %v215
    %219 = vadd.xlane.f32.xlu0 %v217
    %v220 = vpop.xlane.xlu0 %219
    %221 = vadd.xlane.f32.xlu0 %v218
    %v222 = vpop.xlane.xlu0 %221
    %223 = vmatprep.subr.mxu0 0.0
    %224 = vmatpush1.msra.mxu0 %v110
    %225 = vmatprep.subr.mxu0 0.0
    %226 = vmatpush1.msra.mxu0 %v111
    %227 = vmatprep.subr.mxu0 0.0
    %228 = vmatpush1.msra.mxu0 %v112
    %229 = vmatprep.subr.mxu0 0.0
    %230 = vmatpush1.msra.mxu0 %v113
    %231 = vmatprep.subr.mxu0 0.0
    %232 = vmatpush1.msra.mxu0 %v114
    %233 = vmatprep.subr.mxu0 0.0
    %234 = vmatpush1.msra.mxu0 %v115
    %235 = vmatprep.subr.mxu0 0.0
    %236 = vmatpush1.msra.mxu0 %v116
    %237 = vmatprep.subr.mxu0 0.0
    %238 = vmatpush1.msra.mxu0 %v117
    %239 = vmatprep.subr.mxu0 0.0
    %240 = vmatpush1.msra.mxu0 %v118
    %241 = vmatprep.subr.mxu0 0.0
    %242 = vmatpush1.msra.mxu0 %v119
    %243 = vmatprep.subr.mxu0 0.0
    %244 = vmatpush1.msra.mxu0 %v120
    %245 = vmatprep.subr.mxu0 0.0
    %246 = vmatpush1.msra.mxu0 %v121
    %247 = vmatprep.subr.mxu0 0.0
    %248 = vmatpush1.msra.mxu0 %v122
    %249 = vmatprep.subr.mxu0 0.0
    %250 = vmatpush1.msra.mxu0 %v123
    %251 = vmatprep.subr.mxu0 0.0
    %252 = vmatpush1.msra.mxu0 %v124
    %253 = vmatprep.subr.mxu0 0.0
    %254 = vmatpush1.msra.mxu0 %v125
    %255 = vmatprep.subr.mxu0 0.0
    %256 = vmatpush1.msra.mxu0 0.0
    %257 = vmatprep.subr.mxu0 0.0
    %258 = vmatpush1.msra.mxu0 0.0
    %259 = vmatprep.subr.mxu0 0.0
    %260 = vmatpush1.msra.mxu0 0.0
    %261 = vmatprep.subr.mxu0 0.0
    %262 = vmatpush1.msra.mxu0 0.0
    %263 = vmatprep.subr.mxu0 0.0
    %264 = vmatpush1.msra.mxu0 0.0
    %265 = vmatprep.subr.mxu0 0.0
    %266 = vmatpush1.msra.mxu0 0.0
    %267 = vmatprep.subr.mxu0 0.0
    %268 = vmatpush1.msra.mxu0 0.0
    %269 = vmatprep.subr.mxu0 0.0
    %270 = vmatpush1.msra.mxu0 0.0
    %271 = vmatprep.subr.mxu0 0.0
    %272 = vmatpush1.msra.mxu0 0.0
    %273 = vmatprep.subr.mxu0 0.0
    %274 = vmatpush1.msra.mxu0 0.0
    %275 = vmatprep.subr.mxu0 0.0
    %276 = vmatpush1.msra.mxu0 0.0
    %277 = vmatprep.subr.mxu0 0.0
    %278 = vmatpush1.msra.mxu0 0.0
    %279 = vmatprep.subr.mxu0 0.0
    %280 = vmatpush1.msra.mxu0 0.0
    %281 = vmatprep.subr.mxu0 0.0
    %282 = vmatpush1.msra.mxu0 0.0
    %283 = vmatprep.subr.mxu0 0.0
    %284 = vmatpush1.msra.mxu0 0.0
    %285 = vmatprep.subr.mxu0 0.0
    %286 = vmatpush1.msra.mxu0 0.0
    %287 = vmatprep.mubr.f32.mxu0 0.0
    %288 = vmatmul.mubr.f32.gmra.mrb[0].mxu0 %v106
    %v289 = vpop.f32.mrb[0].mxu0
    %v290 = vadd.f32 %v132, %v289
    %v291 = vpop.f32.mrb[0].mxu0
    %292 = vmatprep.mubr.f32.mxu0 0.0
    %293 = vmatmul.mubr.f32.gmra.mrb[0].mxu0 %v107
    %v294 = vpop.f32.mrb[0].mxu0
    %v295 = vadd.f32 %v132, %v294
    %v296 = vpop.f32.mrb[0].mxu0
    %297 = vdwg.mxu0
    %v298 = vtanh.pop %v290
    %v299 = vtanh.pop %v295
    %v300 = vmul.f32 %v298, %v215
    %v301 = vmul.f32 %v299, %v215
    %302 = vadd.xlane.f32.xlu0 %v300
    %v303 = vpop.xlane.xlu0 %302
    %304 = vadd.xlane.f32.xlu0 %v301
    %v305 = vpop.xlane.xlu0 %304
    %306 = vmatprep.subr.mxu0 0.0
    %307 = vmatpush1.msra.mxu0 %v110
    %308 = vmatprep.subr.mxu0 0.0
    %309 = vmatpush1.msra.mxu0 %v111
    %310 = vmatprep.subr.mxu0 0.0
    %311 = vmatpush1.msra.mxu0 %v112
    %312 = vmatprep.subr.mxu0 0.0
    %313 = vmatpush1.msra.mxu0 %v113
    %314 = vmatprep.subr.mxu0 0.0
    %315 = vmatpush1.msra.mxu0 %v114
    %316 = vmatprep.subr.mxu0 0.0
    %317 = vmatpush1.msra.mxu0 %v115
    %318 = vmatprep.subr.mxu0 0.0
    %319 = vmatpush1.msra.mxu0 %v116
    %320 = vmatprep.subr.mxu0 0.0
    %321 = vmatpush1.msra.mxu0 %v117
    %322 = vmatprep.subr.mxu0 0.0
    %323 = vmatpush1.msra.mxu0 %v118
    %324 = vmatprep.subr.mxu0 0.0
    %325 = vmatpush1.msra.mxu0 %v119
    %326 = vmatprep.subr.mxu0 0.0
    %327 = vmatpush1.msra.mxu0 %v120
    %328 = vmatprep.subr.mxu0 0.0
    %329 = vmatpush1.msra.mxu0 %v121
    %330 = vmatprep.subr.mxu0 0.0
    %331 = vmatpush1.msra.mxu0 %v122
    %332 = vmatprep.subr.mxu0 0.0
    %333 = vmatpush1.msra.mxu0 %v123
    %334 = vmatprep.subr.mxu0 0.0
    %335 = vmatpush1.msra.mxu0 %v124
    %336 = vmatprep.subr.mxu0 0.0
    %337 = vmatpush1.msra.mxu0 %v125
    %338 = vmatprep.subr.mxu0 0.0
    %339 = vmatpush1.msra.mxu0 0.0
    %340 = vmatprep.subr.mxu0 0.0
    %341 = vmatpush1.msra.mxu0 0.0
    %342 = vmatprep.subr.mxu0 0.0
    %343 = vmatpush1.msra.mxu0 0.0
    %344 = vmatprep.subr.mxu0 0.0
    %345 = vmatpush1.msra.mxu0 0.0
    %346 = vmatprep.subr.mxu0 0.0
    %347 = vmatpush1.msra.mxu0 0.0
    %348 = vmatprep.subr.mxu0 0.0
    %349 = vmatpush1.msra.mxu0 0.0
    %350 = vmatprep.subr.mxu0 0.0
    %351 = vmatpush1.msra.mxu0 0.0
    %352 = vmatprep.subr.mxu0 0.0
    %353 = vmatpush1.msra.mxu0 0.0
    %354 = vmatprep.subr.mxu0 0.0
    %355 = vmatpush1.msra.mxu0 0.0
    %356 = vmatprep.subr.mxu0 0.0
    %357 = vmatpush1.msra.mxu0 0.0
    %358 = vmatprep.subr.mxu0 0.0
    %359 = vmatpush1.msra.mxu0 0.0
    %360 = vmatprep.subr.mxu0 0.0
    %361 = vmatpush1.msra.mxu0 0.0
    %362 = vmatprep.subr.mxu0 0.0
    %363 = vmatpush1.msra.mxu0 0.0
    %364 = vmatprep.subr.mxu0 0.0
    %365 = vmatpush1.msra.mxu0 0.0
    %366 = vmatprep.subr.mxu0 0.0
    %367 = vmatpush1.msra.mxu0 0.0
    %368 = vmatprep.subr.mxu0 0.0
    %369 = vmatpush1.msra.mxu0 0.0
    %370 = vmatprep.mubr.f32.mxu0 0.0
    %371 = vmatmul.mubr.f32.gmra.mrb[0].mxu0 %v108
    %v372 = vpop.f32.mrb[0].mxu0
    %v373 = vadd.f32 %v132, %v372
    %v374 = vpop.f32.mrb[0].mxu0
    %375 = vmatprep.mubr.f32.mxu0 0.0
    %376 = vmatmul.mubr.f32.gmra.mrb[0].mxu0 %v109
    %v377 = vpop.f32.mrb[0].mxu0
    %v378 = vadd.f32 %v132, %v377
    %v379 = vpop.f32.mrb[0].mxu0
    %380 = vdwg.mxu0
    %v381 = vtanh.pop %v373
    %v382 = vtanh.pop %v378
    %v383 = vmul.f32 %v381, %v215
    %v384 = vmul.f32 %v382, %v215
    %385 = vadd.xlane.f32.xlu0 %v383
    %v386 = vpop.xlane.xlu0 %385
    %387 = vadd.xlane.f32.xlu0 %v384
    %v388 = vpop.xlane.xlu0 %387
    %v389 = vmax.f32 %v220, %v303
    %v390 = vmax.f32 %v222, %v305
    %v391 = vmax.f32 %v389, %v386
    %v392 = vmax.f32 %v390, %v388
    %v393 = vsub.f32 %v220, %v391
    %v394 = vsub.f32 %v222, %v392
    %v395 = vmul.f32 %v393, 1.442695
    %v396 = vpow.pop %v395
    %v397 = vmul.f32 %v394, 1.442695
    %v398 = vpow.pop %v397
    %v399 = vsub.f32 %v303, %v391
    %v400 = vsub.f32 %v305, %v392
    %v401 = vmul.f32 %v399, 1.442695
    %v402 = vpow.pop %v401
    %v403 = vmul.f32 %v400, 1.442695
    %v404 = vpow.pop %v403
    %v405 = vsub.f32 %v386, %v391
    %v406 = vsub.f32 %v388, %v392
    %v407 = vmul.f32 %v405, 1.442695
    %v408 = vpow.pop %v407
    %v409 = vmul.f32 %v406, 1.442695
    %v410 = vpow.pop %v409
    %v411 = vadd.f32 %v396, %v402
    %v412 = vadd.f32 %v398, %v404
    %v413 = vadd.f32 %v411, %v408
    %v414 = vadd.f32 %v412, %v410
    %v415 = vrcp.pop %v413
    %v416 = vrcp.pop %v414
    %v417 = vmul.f32 %v396, %v104
    %v418 = vmul.f32 %v398, %v105
    %v419 = vmul.f32 %v402, %v106
    %v420 = vmul.f32 %v404, %v107
    %v421 = vadd.f32 %v417, %v419
    %v422 = vadd.f32 %v418, %v420
    %v423 = vmul.f32 %v408, %v108
    %v424 = vmul.f32 %v410, %v109
    %v425 = vadd.f32 %v421, %v423
    %v426 = vadd.f32 %v422, %v424
    %v427 = vmul.f32 %v425, %v415
    %v428 = vmul.f32 %v426, %v416
    %v429 = vld [vmem:[#allocation10] sm:$0xff]
    %v430 = vld [vmem:[#allocation10 + $0x8] sm:$0xff]
    %v431 = vld [vmem:[#allocation10 + $0x10] sm:$0xff]
    %v432 = vld [vmem:[#allocation10 + $0x18] sm:$0xff]
    %v433 = vld [vmem:[#allocation10 + $0x20] sm:$0xff]
    %v434 = vld [vmem:[#allocation10 + $0x28] sm:$0xff]
    %v435 = vld [vmem:[#allocation10 + $0x30] sm:$0xff]
    %v436 = vld [vmem:[#allocation10 + $0x38] sm:$0xff]
    %v437 = vld [vmem:[#allocation10 + $0x40] sm:$0xff]
    %v438 = vld [vmem:[#allocation10 + $0x48] sm:$0xff]
    %v439 = vld [vmem:[#allocation10 + $0x50] sm:$0xff]
    %v440 = vld [vmem:[#allocation10 + $0x58] sm:$0xff]
    %v441 = vld [vmem:[#allocation10 + $0x60] sm:$0xff]
    %v442 = vld [vmem:[#allocation10 + $0x68] sm:$0xff]
    %v443 = vld [vmem:[#allocation10 + $0x70] sm:$0xff]
    %v444 = vld [vmem:[#allocation10 + $0x78] sm:$0xff]
    %v445 = vld [vmem:[%s7] sm:$0x1]
    %v447 = vlaneseq
    %v448 = vshrl.u32 %v447, 7
    %v449 = vsub.s32 0, %v448
    %v450 = vrot.slane %v445, %v449
    %452 = vmatprep.subr.mxu0 0.0
    %453 = vmatpush1.msra.mxu0 %v429
    %454 = vmatprep.subr.mxu0 0.0
    %455 = vmatpush1.msra.mxu0 %v430
    %456 = vmatprep.subr.mxu0 0.0
    %457 = vmatpush1.msra.mxu0 %v431
    %458 = vmatprep.subr.mxu0 0.0
    %459 = vmatpush1.msra.mxu0 %v432
    %460 = vmatprep.subr.mxu0 0.0
    %461 = vmatpush1.msra.mxu0 %v433
    %462 = vmatprep.subr.mxu0 0.0
    %463 = vmatpush1.msra.mxu0 %v434
    %464 = vmatprep.subr.mxu0 0.0
    %465 = vmatpush1.msra.mxu0 %v435
    %466 = vmatprep.subr.mxu0 0.0
    %467 = vmatpush1.msra.mxu0 %v436
    %468 = vmatprep.subr.mxu0 0.0
    %469 = vmatpush1.msra.mxu0 %v437
    %470 = vmatprep.subr.mxu0 0.0
    %471 = vmatpush1.msra.mxu0 %v438
    %472 = vmatprep.subr.mxu0 0.0
    %473 = vmatpush1.msra.mxu0 %v439
    %474 = vmatprep.subr.mxu0 0.0
    %475 = vmatpush1.msra.mxu0 %v440
    %476 = vmatprep.subr.mxu0 0.0
    %477 = vmatpush1.msra.mxu0 %v441
    %478 = vmatprep.subr.mxu0 0.0
    %479 = vmatpush1.msra.mxu0 %v442
    %480 = vmatprep.subr.mxu0 0.0
    %481 = vmatpush1.msra.mxu0 %v443
    %482 = vmatprep.subr.mxu0 0.0
    %483 = vmatpush1.msra.mxu0 %v444
    %484 = vmatprep.subr.mxu0 0.0
    %485 = vmatpush1.msra.mxu0 0.0
    %486 = vmatprep.subr.mxu0 0.0
    %487 = vmatpush1.msra.mxu0 0.0
    %488 = vmatprep.subr.mxu0 0.0
    %489 = vmatpush1.msra.mxu0 0.0
    %490 = vmatprep.subr.mxu0 0.0
    %491 = vmatpush1.msra.mxu0 0.0
    %492 = vmatprep.subr.mxu0 0.0
    %493 = vmatpush1.msra.mxu0 0.0
    %494 = vmatprep.subr.mxu0 0.0
    %495 = vmatpush1.msra.mxu0 0.0
    %496 = vmatprep.subr.mxu0 0.0
    %497 = vmatpush1.msra.mxu0 0.0
    %498 = vmatprep.subr.mxu0 0.0
    %499 = vmatpush1.msra.mxu0 0.0
    %500 = vmatprep.subr.mxu0 0.0
    %501 = vmatpush1.msra.mxu0 0.0
    %502 = vmatprep.subr.mxu0 0.0
    %503 = vmatpush1.msra.mxu0 0.0
    %504 = vmatprep.subr.mxu0 0.0
    %505 = vmatpush1.msra.mxu0 0.0
    %506 = vmatprep.subr.mxu0 0.0
    %507 = vmatpush1.msra.mxu0 0.0
    %508 = vmatprep.subr.mxu0 0.0
    %509 = vmatpush1.msra.mxu0 0.0
    %510 = vmatprep.subr.mxu0 0.0
    %511 = vmatpush1.msra.mxu0 0.0
    %512 = vmatprep.subr.mxu0 0.0
    %513 = vmatpush1.msra.mxu0 0.0
    %514 = vmatprep.subr.mxu0 0.0
    %515 = vmatpush1.msra.mxu0 0.0
    %516 = vmatprep.mubr.f32.mxu0 0.0
    %517 = vmatmul.mubr.f32.gmra.mrb[0].mxu0 %v427
    %v518 = vpop.f32.mrb[0].mxu0
    %v519 = vadd.f32 %v450, %v518
    %v520 = vpop.f32.mrb[0].mxu0
    %521 = vmatprep.mubr.f32.mxu0 0.0
    %522 = vmatmul.mubr.f32.gmra.mrb[0].mxu0 %v428
    %v523 = vpop.f32.mrb[0].mxu0
    %v524 = vadd.f32 %v450, %v523
    %v525 = vpop.f32.mrb[0].mxu0
    %526 = vdwg.mxu0
    %527 = vadd.xlane.f32.xlu0 %v519
    %v528 = vpop.xlane.xlu0 %527
    %529 = vadd.xlane.f32.xlu0 %v524
    %v530 = vpop.xlane.xlu0 %529
    %v531 = vrcp.pop 128.0
    %v532 = vmul.f32 %v528, %v531
    %v533 = vmul.f32 %v530, %v531
    %v534 = vsub.f32 %v519, %v532
    %v535 = vsub.f32 %v524, %v533
    %v536 = vmul.f32 %v534, %v534
    %v537 = vmul.f32 %v535, %v535
    %538 = vadd.xlane.f32.xlu0 %v536
    %v539 = vpop.xlane.xlu0 %538
    %540 = vadd.xlane.f32.xlu0 %v537
    %v541 = vpop.xlane.xlu0 %540
    %v542 = vmul.f32 %v539, %v531
    %v543 = vmul.f32 %v541, %v531
    %v544 = vadd.f32 %v542, 1e-05
    %v545 = vadd.f32 %v543, 1e-05
    %v546 = vrsqrt.pop %v544
    %v547 = vrsqrt.pop %v545
    %v548 = vmul.f32 %v534, %v546
    %v549 = vmul.f32 %v535, %v547
    %v550 = vld [vmem:[%s8] sm:$0x1]
    %v552 = vlaneseq
    %v553 = vshrl.u32 %v552, 7
    %v554 = vsub.s32 0, %v553
    %v555 = vrot.slane %v550, %v554
    %v557 = vmul.f32 %v548, %v555
    %v558 = vmul.f32 %v549, %v555
    %v559 = vld [vmem:[%s9] sm:$0x1]
    %v561 = vlaneseq
    %v562 = vshrl.u32 %v561, 7
    %v563 = vsub.s32 0, %v562
    %v564 = vrot.slane %v559, %v563
    %v566 = vadd.f32 %v557, %v564
    %v567 = vadd.f32 %v558, %v564
    %568 = vst [vmem:[#allocation11] sm:$0xff] %v566
    %569 = vst [vmem:[#allocation11 + $0x8] sm:$0xff] %v567
    // Predicated region
    $region62: #{tpu_custom_call.1} parent=1 // pred_check
      _
    $region63: #{tpu_custom_call.1} parent=1 // pred_check_branch
      %571 = sbr.rel (0) target = $region65
    $region64: #{tpu_custom_call.1} parent=1 // pred_region
      %s573 = ssub.s32 256, 256
      %574 = vsyncadd [#allocation4], %s573
      %s575 = sshll.u32 [#allocation11], 4
      %s576 = int_to_ptr.vmem [resolvable:$true] %s575
      %581 = dma.vmem_to_hbm [thread:$0]  %s576, 256, %s10, [#allocation4], 128, 128, 8
    $region65: #{tpu_custom_call.1} parent=1 // pred_fallthru
      _
    // Predicated region
    $region66: #{tpu_custom_call.1} parent=1 // pred_check
      _
    $region67: #{tpu_custom_call.1} parent=1 // pred_check_branch
      %583 = sbr.rel (0) target = $region69
    $region68: #{tpu_custom_call.1} parent=1 // pred_region
      %584 = dma.done [#allocation4], 256
    $region69: #{tpu_custom_call.1} parent=1 // pred_fallthru
      _
    %585 = vsyncpa [#allocation3], 1
    %586 = vsyncpa [#allocation6], 1
    %587 = vsyncpa [#allocation9], 1
    %588 = vsyncpa [#allocation4], 1

</llo_original>
